<compile_context>
chip_gen: v6e
topology: v6e:2x2x1
jax: 0.10.0
libtpu: 0.0.40
codegen_flags: <defaults>
</compile_context>

<pallas_src>
import jax
import jax.numpy as jnp
from jax.experimental import pallas as pl
from jax.experimental.pallas import tpu as pltpu

# TODO(synk): extract_model / restore_model are externally-injected nn.Modules
# with unspecified architecture; they are modeled as identity passthroughs.


def _round_up(x, m):
    return (x + m - 1) // m * m


def _vmem_budget_bytes():
    """Generation-aware VMEM plan (v5e/v6e: 128 MiB, v7x: 64 MiB) w/ headroom."""
    try:
        cap = int(pltpu.get_tpu_info().vmem_capacity_bytes)
    except Exception:
        cap = 64 * 1024 * 1024  # fall back to the most conservative (v7x)
    return cap * 3 // 4


# ---------------------------------------------------------------------------
# Kernel A: weights fully resident in VMEM (single buffer), 1-D batch grid.
# ---------------------------------------------------------------------------
def _freqnet_resident_kernel(x_ref, we_ref, be_ref, wd_ref, bd_ref, o_ref):
    """Fused encoder->decoder: y = (x @ We + be) @ Wd + bd.

    x arrives in its native dtype and is cast to the MXU dtype on the VPU
    (free under the DMA bound).  Both matmuls accumulate in f32 on the MXU;
    bias adds are done in f32 on the VPU.
    """
    x = x_ref[...].astype(we_ref.dtype)                               # (TB, D)
    h = jnp.dot(x, we_ref[...], preferred_element_type=jnp.float32)   # (TB, Cp) f32
    h = h + be_ref[...]
    y = jnp.dot(h.astype(wd_ref.dtype), wd_ref[...],
                preferred_element_type=jnp.float32)                   # (TB, Dp) f32
    o_ref[...] = (y + bd_ref[...]).astype(o_ref.dtype)


# ---------------------------------------------------------------------------
# Kernel B: compressed dim (Cp) tiled with an f32 accumulator, for large D*C
# where fully-resident weights would not fit the per-generation VMEM budget
# (hits earliest on v7x's 64 MiB).  Weight blocks are streamed/double-buffered.
# ---------------------------------------------------------------------------
def _freqnet_ctiled_kernel(x_ref, we_ref, be_ref, wd_ref, bd_ref, o_ref, acc_ref):
    c = pl.program_id(1)

    @pl.when(c == 0)
    def _init():
        acc_ref[...] = jnp.broadcast_to(bd_ref[...], acc_ref.shape)   # start from bias

    x = x_ref[...].astype(we_ref.dtype)                               # (TB, D)
    h = jnp.dot(x, we_ref[...], preferred_element_type=jnp.float32)   # (TB, tc)
    h = h + be_ref[...]
    acc_ref[...] += jnp.dot(h.astype(wd_ref.dtype), wd_ref[...],
                            preferred_element_type=jnp.float32)       # (TB, Dp)

    @pl.when(c == pl.num_programs(1) - 1)
    def _finalize():
        o_ref[...] = acc_ref[...].astype(o_ref.dtype)


def frequence_net_forward(x, w_enc, b_enc, w_dec, b_dec, *,
                          tile_b=None,
                          compute_dtype=jnp.bfloat16,
                          out_dtype=None):
    """
    x:      [B, D]   (any float dtype; streamed as-is, cast in-kernel)
    w_enc:  [D, C]   (PyTorch Linear weight transposed: in x out)
    b_enc:  [C]
    w_dec:  [C, D]
    b_dec:  [D]
    returns [B, D]   in out_dtype (defaults to x.dtype; pass bf16 to halve
                      the output HBM stream when the consumer accepts it)
    """
    B, D = x.shape
    C = w_enc.shape[1]
    assert w_enc.shape == (D, C) and w_dec.shape == (C, D)
    assert b_enc.shape == (C,) and b_dec.shape == (D,)
    if out_dtype is None:
        out_dtype = x.dtype

    x_isz = jnp.dtype(x.dtype).itemsize
    o_isz = jnp.dtype(out_dtype).itemsize
    c_isz = jnp.dtype(compute_dtype).itemsize

    # Lane-dense padded dims (zero padding keeps the math exact).
    Dp = max(128, _round_up(D, 128))
    Cp = max(128, _round_up(C, 128))

    vmem_budget = _vmem_budget_bytes()
    full_b = _round_up(B, 16)

    # Steady-state VMEM bytes per batch row under the resident-weight plan:
    # double-buffered x tile (native dtype) + double-buffered out tile
    # + f32 intermediates h / y + compute-dtype casts of x / h.
    row_bytes = 2 * D * x_isz + 2 * Dp * o_isz + (Cp + Dp) * 4 + (D + Cp) * c_isz
    resident_w_bytes = (D * Cp + Cp * Dp) * c_isz + (Cp + Dp) * 4
    # Keep weights resident only if at least a 256-row activation tile still fits.
    weights_resident = resident_w_bytes + 256 * row_bytes <= vmem_budget

    if weights_resident:
        # ---- batch tile: as big as the VMEM budget allows (cap 2048 rows).
        if tile_b is not None:
            tb = _round_up(min(int(tile_b), full_b), 16)
        else:
            tb = (vmem_budget - resident_w_bytes) // max(row_bytes, 1)
            tb = max(16, min(tb // 16 * 16, 2048, full_b))
            # v7x has two TensorCores: give the "parallel" batch axis at least
            # two grid steps for large batches (also lets the pipeline overlap
            # DMA with compute).  Costs only ~0.35us per step on 1-TC chips.
            if tb >= full_b and B >= 512:
                tb = _round_up(-(-B // 2), 16)
        tb = max(16, tb)
        nb = pl.cdiv(B, tb)

        est = resident_w_bytes + tb * row_bytes
        compiler_kwargs = dict(dimension_semantics=("parallel",))
        if est > 16 * 1024 * 1024:  # above the smallest default scoped-VMEM limit
            compiler_kwargs["vmem_limit_bytes"] = int(min(est + est // 4, vmem_budget))
    else:
        # ---- weight-tiled path: moderate batch tile, Cp axis streamed.
        tb = _round_up(min(int(tile_b) if tile_b is not None else 512, full_b), 16)
        tb = max(16, tb)
        nb = pl.cdiv(B, tb)

        fixed = tb * (2 * D * x_isz + 2 * Dp * o_isz + Dp * 4) + 2 * Dp * 4
        # per unit of tc: double-buffered We/Wd/be blocks + f32 h + its cast.
        per_tc = 2 * (D + Dp) * c_isz + 2 * 4 + tb * (4 + c_isz)
        avail = max(vmem_budget - fixed, 0)
        tc = max(128, (avail // max(per_tc, 1)) // 128 * 128)
        tc = min(tc, max(128, _round_up(C, 128)))
        Cp = _round_up(max(C, 1), tc)  # tc must divide Cp (reduction tail must be exact)
        nc = Cp // tc

        est = fixed + tc * per_tc
        compiler_kwargs = dict(dimension_semantics=("parallel", "arbitrary"))
        if est > 16 * 1024 * 1024:
            compiler_kwargs["vmem_limit_bytes"] = int(min(est + est // 4, vmem_budget))

    # ---- Zero-pad weights/biases to the padded dims (exact math: padded h
    # columns are 0 and hit zero rows of Wd; padded output columns carry a
    # zero bias and are sliced off below).  One-time weight prep only -- the
    # activations x are neither padded nor cast on the host (no extra HBM pass).
    if Cp != C:
        w_enc = jnp.pad(w_enc, ((0, 0), (0, Cp - C)))
        b_enc = jnp.pad(b_enc, (0, Cp - C))
        w_dec = jnp.pad(w_dec, ((0, Cp - C), (0, 0)))
    if Dp != D:
        # TODO(synk): lane-dense output needs a trailing [:, :D] slice (one
        # extra output pass); preferred over masked partial stores per review.
        w_dec = jnp.pad(w_dec, ((0, 0), (0, Dp - D)))
        b_dec = jnp.pad(b_dec, (0, Dp - D))
    we = w_enc.astype(compute_dtype)
    wd = w_dec.astype(compute_dtype)
    be = b_enc.reshape(1, Cp).astype(jnp.float32)
    bd = b_dec.reshape(1, Dp).astype(jnp.float32)

    if weights_resident:
        out = pl.pallas_call(
            _freqnet_resident_kernel,
            out_shape=jax.ShapeDtypeStruct((B, Dp), out_dtype),
            grid_spec=pltpu.PrefetchScalarGridSpec(
                num_scalar_prefetch=0,
                grid=(nb,),
                in_specs=[
                    # Activations: pipelined (double-buffered) batch tiles, native dtype.
                    pl.BlockSpec((tb, D), lambda i: (i, 0)),
                    # Weights / biases are block-invariant: whole in VMEM once.
                    pl.BlockSpec(memory_space=pltpu.MemorySpace.VMEM),  # We
                    pl.BlockSpec(memory_space=pltpu.MemorySpace.VMEM),  # be
                    pl.BlockSpec(memory_space=pltpu.MemorySpace.VMEM),  # Wd
                    pl.BlockSpec(memory_space=pltpu.MemorySpace.VMEM),  # bd
                ],
                out_specs=pl.BlockSpec((tb, Dp), lambda i: (i, 0)),
            ),
            compiler_params=pltpu.CompilerParams(**compiler_kwargs),
        )(x, we, be, wd, bd)
    else:
        out = pl.pallas_call(
            _freqnet_ctiled_kernel,
            out_shape=jax.ShapeDtypeStruct((B, Dp), out_dtype),
            grid_spec=pltpu.PrefetchScalarGridSpec(
                num_scalar_prefetch=0,
                grid=(nb, nc),
                in_specs=[
                    pl.BlockSpec((tb, D), lambda b, c: (b, 0)),   # x (fetched once per b)
                    pl.BlockSpec((D, tc), lambda b, c: (0, c)),   # We column block
                    pl.BlockSpec((1, tc), lambda b, c: (0, c)),   # be block
                    pl.BlockSpec((tc, Dp), lambda b, c: (c, 0)),  # Wd row block
                    pl.BlockSpec(memory_space=pltpu.MemorySpace.VMEM),  # bd (tiny, resident)
                ],
                out_specs=pl.BlockSpec((tb, Dp), lambda b, c: (b, 0)),
                scratch_shapes=[pltpu.VMEM((tb, Dp), jnp.float32)],
            ),
            compiler_params=pltpu.CompilerParams(**compiler_kwargs),
        )(x, we, be, wd, bd)

    return out[:, :D] if Dp != D else out


def xavier_normal(key, shape_out_in):
    """nn.init.xavier_normal_ for a Linear weight of shape (out, in)."""
    fan_out, fan_in = shape_out_in
    std = (2.0 / (fan_in + fan_out)) ** 0.5
    return std * jax.random.normal(key, shape_out_in, dtype=jnp.float32)


if __name__ == "__main__":
    # Small shapes consistent with the module:
    #   input_dim = 128, compress_ratio = 4 -> compress_dim = 32.
    #   batch = 24 (not a multiple of the tile) to exercise boundary masking.
    B, INPUT_DIM, COMPRESS_RATIO = 24, 128, 4
    assert INPUT_DIM % COMPRESS_RATIO == 0
    COMPRESS_DIM = INPUT_DIM // COMPRESS_RATIO

    key = jax.random.PRNGKey(0)
    k_x, k_we, k_wd = jax.random.split(key, 3)

    # Input data (extract_model == identity, so this is also extract_feature).
    x = jax.random.normal(k_x, (B, INPUT_DIM), dtype=jnp.float32)

    # Deterministic parameter init mirroring the PyTorch __init__:
    #   xavier_normal_ on Linear weights, zeros on biases.
    w_enc_torch = xavier_normal(k_we, (COMPRESS_DIM, INPUT_DIM))  # (out, in)
    w_dec_torch = xavier_normal(k_wd, (INPUT_DIM, COMPRESS_DIM))  # (out, in)
    b_enc = jnp.zeros((COMPRESS_DIM,), dtype=jnp.float32)
    b_dec = jnp.zeros((INPUT_DIM,), dtype=jnp.float32)

    # Transpose to [in, out] for the kernel's row-major matmuls.
    w_enc = w_enc_torch.T   # (INPUT_DIM, COMPRESS_DIM)
    w_dec = w_dec_torch.T   # (COMPRESS_DIM, INPUT_DIM)

    out = frequence_net_forward(x, w_enc, b_enc, w_dec, b_dec)
    out = jax.block_until_ready(out)

    # Reference check in plain JAX f32 (same math as the PyTorch forward).
    # The kernel casts MXU operands to bf16 (f32 accumulation) -> relaxed tol.
    ref = (x @ w_enc + b_enc) @ w_dec + b_dec
    assert out.shape == (B, INPUT_DIM)
    assert out.dtype == x.dtype
    assert jnp.allclose(out, ref, atol=5e-2, rtol=5e-2)

    print("KERNEL_OK")
</pallas_src>

<mosaic_0001>
module attributes {stable_mosaic.version = 11 : i64} {
  func.func @_freqnet_resident_kernel(%arg0: i32, %arg1: memref<32x128xf32, #tpu.memory_space<vmem>>, %arg2: memref<128x128xbf16, #tpu.memory_space<vmem>>, %arg3: memref<1x128xf32, #tpu.memory_space<vmem>>, %arg4: memref<128x128xbf16, #tpu.memory_space<vmem>>, %arg5: memref<1x128xf32, #tpu.memory_space<vmem>>, %arg6: memref<32x128xf32, #tpu.memory_space<vmem>>) attributes {dimension_semantics = [#tpu.dimension_semantics<parallel>], iteration_bounds = array<i64: 1>, scalar_prefetch = 0 : i64, scratch_operands = 0 : i64, tpu.core_type = #tpu.core_type<tc>, window_params = [{transform_indices = @transform_0, window_bounds = array<i64: 32, 128>}, {pipeline_mode = #tpu.pipeline_mode<synchronous>, transform_indices = @transform_1, window_bounds = array<i64: 128, 128>}, {pipeline_mode = #tpu.pipeline_mode<synchronous>, transform_indices = @transform_2, window_bounds = array<i64: 1, 128>}, {pipeline_mode = #tpu.pipeline_mode<synchronous>, transform_indices = @transform_3, window_bounds = array<i64: 128, 128>}, {pipeline_mode = #tpu.pipeline_mode<synchronous>, transform_indices = @transform_4, window_bounds = array<i64: 1, 128>}, {transform_indices = @transform_5, window_bounds = array<i64: 32, 128>}]} {
    %c0 = arith.constant 0 : index
    %c0_0 = arith.constant 0 : index
    %0 = vector.load %arg1[%c0, %c0_0] : memref<32x128xf32, #tpu.memory_space<vmem>>, vector<32x128xf32>
    %1 = arith.truncf %0 : vector<32x128xf32> to vector<32x128xbf16>
    %c0_1 = arith.constant 0 : index
    %c0_2 = arith.constant 0 : index
    %2 = vector.load %arg2[%c0_1, %c0_2] : memref<128x128xbf16, #tpu.memory_space<vmem>>, vector<128x128xbf16>
    %cst = arith.constant dense<0.000000e+00> : vector<32x128xf32>
    %3 = tpu.matmul %1, %2, %cst {dimension_numbers = #tpu.dot_dimension_numbers<[1], [0], [0], [1], [0, 0, 1, 1], [], []>} : vector<32x128xbf16>, vector<128x128xbf16>, vector<32x128xf32> -> vector<32x128xf32>
    %c0_3 = arith.constant 0 : index
    %c0_4 = arith.constant 0 : index
    %4 = vector.load %arg3[%c0_3, %c0_4] : memref<1x128xf32, #tpu.memory_space<vmem>>, vector<1x128xf32>
    %5 = vector.broadcast %4 : vector<1x128xf32> to vector<32x128xf32>
    %6 = arith.addf %3, %5 : vector<32x128xf32>
    %7 = arith.truncf %6 : vector<32x128xf32> to vector<32x128xbf16>
    %c0_5 = arith.constant 0 : index
    %c0_6 = arith.constant 0 : index
    %8 = vector.load %arg4[%c0_5, %c0_6] : memref<128x128xbf16, #tpu.memory_space<vmem>>, vector<128x128xbf16>
    %cst_7 = arith.constant dense<0.000000e+00> : vector<32x128xf32>
    %9 = tpu.matmul %7, %8, %cst_7 {dimension_numbers = #tpu.dot_dimension_numbers<[1], [0], [0], [1], [0, 0, 1, 1], [], []>} : vector<32x128xbf16>, vector<128x128xbf16>, vector<32x128xf32> -> vector<32x128xf32>
    %c0_8 = arith.constant 0 : index
    %c0_9 = arith.constant 0 : index
    %10 = vector.load %arg5[%c0_8, %c0_9] : memref<1x128xf32, #tpu.memory_space<vmem>>, vector<1x128xf32>
    %11 = vector.broadcast %10 : vector<1x128xf32> to vector<32x128xf32>
    %12 = arith.addf %9, %11 : vector<32x128xf32>
    %c0_10 = arith.constant 0 : index
    %c0_11 = arith.constant 0 : index
    %13 = vector.load %arg6[%c0_10, %c0_11] : memref<32x128xf32, #tpu.memory_space<vmem>>, vector<32x128xf32>
    tpu.vector_store %arg6[%c0_10, %c0_11], %12 {strides = array<i32>} : memref<32x128xf32, #tpu.memory_space<vmem>>, vector<32x128xf32>,
    return
  }
  func.func @transform_0(%arg0: i32) -> (i32, i32) {
    %c0_i32 = arith.constant 0 : i32
    %c0_i32_0 = arith.constant 0 : i32
    return %arg0, %c0_i32 : i32, i32
  }
  func.func @transform_1(%arg0: i32) -> (i32, i32) {
    %c0_i32 = arith.constant 0 : i32
    %c0_i32_0 = arith.constant 0 : i32
    %c0_i32_1 = arith.constant 0 : i32
    return %c0_i32, %c0_i32_0 : i32, i32
  }
  func.func @transform_2(%arg0: i32) -> (i32, i32) {
    %c0_i32 = arith.constant 0 : i32
    %c0_i32_0 = arith.constant 0 : i32
    %c0_i32_1 = arith.constant 0 : i32
    return %c0_i32, %c0_i32_0 : i32, i32
  }
  func.func @transform_3(%arg0: i32) -> (i32, i32) {
    %c0_i32 = arith.constant 0 : i32
    %c0_i32_0 = arith.constant 0 : i32
    %c0_i32_1 = arith.constant 0 : i32
    return %c0_i32, %c0_i32_0 : i32, i32
  }
  func.func @transform_4(%arg0: i32) -> (i32, i32) {
    %c0_i32 = arith.constant 0 : i32
    %c0_i32_0 = arith.constant 0 : i32
    %c0_i32_1 = arith.constant 0 : i32
    return %c0_i32, %c0_i32_0 : i32, i32
  }
  func.func @transform_5(%arg0: i32) -> (i32, i32) {
    %c0_i32 = arith.constant 0 : i32
    %c0_i32_0 = arith.constant 0 : i32
    return %arg0, %c0_i32 : i32, i32
  }
}

</mosaic_0001>

<llo_original>
// kernel: tpu_custom_call.1
$region0: #{tpu_custom_call.1}
  #allocation0 [shape = 'u32[]', space=smem, size = 0x4, offset = 0x4, fixed_abs, tag = 'smem constant byte address 0x4 - core index']
  #allocation1 [shape = 'u32[144,128]{1,0:T(1,128)}', space=vmem, size = 0x12000, scoped, tag = 'internal scratch']
  %s0 = inlined_call_operand.hbm [shape: f32[24,128], index: 0, kind: input, shape index: {}]
  %s1 = inlined_call_operand.hbm [shape: bf16[128,128], index: 1, kind: input, shape index: {}]
  %s2 = inlined_call_operand.vmem [shape: f32[1,128], index: 2, kind: input, shape index: {}]
  %s3 = inlined_call_operand.hbm [shape: bf16[128,128], index: 3, kind: input, shape index: {}]
  %s4 = inlined_call_operand.vmem [shape: f32[1,128], index: 4, kind: input, shape index: {}]
  %s5 = inlined_call_operand.hbm [shape: f32[24,128], index: 5, kind: output, shape index: {}]
  %s6 = sld [smem:[#allocation0]]
  $region42: #{tpu_custom_call.1} parent=0
    _
  %s8 = ssub.s32 1, %s6
  %s9 = scalar_select 0, %s8, %s6
  $region1: #{tpu_custom_call.1} parent=0
    #allocation2 [shape = 'u8[16384]{0}', space=vmem, size = 0x4000, scoped, tag = 'input window, operand 0, single buffered']
    #allocation3 [shape = 's32[1]{0}', space=sflag, size = 0x4, scoped, tag = 'scoped memory for tpu_custom_call.1']
    #allocation4 [shape = 's32[1]{0}', space=sflag, size = 0x4, scoped, tag = 'scoped memory for tpu_custom_call.1']
    #allocation5 [shape = 'u8[32768]{0}', space=vmem, size = 0x8000, scoped, tag = 'input window, operand 1, single buffered']
    #allocation6 [shape = 's32[1]{0}', space=sflag, size = 0x4, scoped, tag = 'scoped memory for tpu_custom_call.1']
    #allocation7 [shape = 'u8[32768]{0}', space=vmem, size = 0x8000, scoped, tag = 'input window, operand 3, single buffered']
    #allocation8 [shape = 'u8[16384]{0}', space=vmem, size = 0x4000, scoped, tag = 'output window, operand 0, single buffered']
    %10 = vsyncpa [#allocation3], 0
    %11 = vsyncpa [#allocation6], 0
    %12 = vsyncpa [#allocation4], 0
    // Predicated region
    $region2: #{tpu_custom_call.1} parent=1 // pred_check
      _
    $region3: #{tpu_custom_call.1} parent=1 // pred_check_branch
      %14 = sbr.rel (0) target = $region5
    $region4: #{tpu_custom_call.1} parent=1 // pred_region
      %s16 = ssub.s32 512, 384
      %17 = vsyncadd [#allocation3], %s16
      %s18 = sshll.u32 [#allocation2], 4
      %s19 = int_to_ptr.vmem [resolvable:$true] %s18
      %24 = dma.hbm_to_vmem [thread:$0]  %s0, 384, %s19, [#allocation3], 128, 128, 8
    $region5: #{tpu_custom_call.1} parent=1 // pred_fallthru
      _
    // Predicated region
    $region6: #{tpu_custom_call.1} parent=1 // pred_check
      _
    $region7: #{tpu_custom_call.1} parent=1 // pred_check_branch
      %26 = sbr.rel (0) target = $region9
    $region8: #{tpu_custom_call.1} parent=1 // pred_region
      %s28 = ssub.s32 1024, 1024
      %29 = vsyncadd [#allocation6], %s28
      %s30 = sshll.u32 [#allocation5], 4
      %s31 = int_to_ptr.vmem [resolvable:$true] %s30
      %36 = dma.hbm_to_vmem [thread:$0]  %s1, 1024, %s31, [#allocation6], 64, 64, 4
    $region9: #{tpu_custom_call.1} parent=1 // pred_fallthru
      _
    // Predicated region
    $region10: #{tpu_custom_call.1} parent=1 // pred_check
      _
    $region11: #{tpu_custom_call.1} parent=1 // pred_check_branch
      %38 = sbr.rel (0) target = $region13
    $region12: #{tpu_custom_call.1} parent=1 // pred_region
      _
    $region13: #{tpu_custom_call.1} parent=1 // pred_fallthru
      _
    // Predicated region
    $region14: #{tpu_custom_call.1} parent=1 // pred_check
      _
    $region15: #{tpu_custom_call.1} parent=1 // pred_check_branch
      %40 = sbr.rel (0) target = $region17
    $region16: #{tpu_custom_call.1} parent=1 // pred_region
      %s42 = ssub.s32 1024, 1024
      %43 = vsyncadd [#allocation6], %s42
      %s44 = sshll.u32 [#allocation7], 4
      %s45 = int_to_ptr.vmem [resolvable:$true] %s44
      %50 = dma.hbm_to_vmem [thread:$0]  %s3, 1024, %s45, [#allocation6], 64, 64, 4
    $region17: #{tpu_custom_call.1} parent=1 // pred_fallthru
      _
    // Predicated region
    $region18: #{tpu_custom_call.1} parent=1 // pred_check
      _
    $region19: #{tpu_custom_call.1} parent=1 // pred_check_branch
      %52 = sbr.rel (0) target = $region21
    $region20: #{tpu_custom_call.1} parent=1 // pred_region
      _
    $region21: #{tpu_custom_call.1} parent=1 // pred_fallthru
      _
    // Predicated region
    $region22: #{tpu_custom_call.1} parent=1 // pred_check
      _
    $region23: #{tpu_custom_call.1} parent=1 // pred_check_branch
      %54 = sbr.rel (0) target = $region25
    $region24: #{tpu_custom_call.1} parent=1 // pred_region
      %55 = dma.done [#allocation3], 512
    $region25: #{tpu_custom_call.1} parent=1 // pred_fallthru
      _
    // Predicated region
    $region26: #{tpu_custom_call.1} parent=1 // pred_check
      _
    $region27: #{tpu_custom_call.1} parent=1 // pred_check_branch
      %57 = sbr.rel (0) target = $region29
    $region28: #{tpu_custom_call.1} parent=1 // pred_region
      %58 = dma.done [#allocation6], 1024
    $region29: #{tpu_custom_call.1} parent=1 // pred_fallthru
      _
    // Predicated region
    $region30: #{tpu_custom_call.1} parent=1 // pred_check
      _
    $region31: #{tpu_custom_call.1} parent=1 // pred_check_branch
      %60 = sbr.rel (0) target = $region33
    $region32: #{tpu_custom_call.1} parent=1 // pred_region
      %61 = dma.done [#allocation6], 1024
    $region33: #{tpu_custom_call.1} parent=1 // pred_fallthru
      _
    %v63 = vld [vmem:[#allocation2] sm:$0xff]
    %v64 = vld [vmem:[#allocation2 + $0x8] sm:$0xff]
    %v65 = vld [vmem:[#allocation2 + $0x10] sm:$0xff]
    %v66 = vld [vmem:[#allocation2 + $0x18] sm:$0xff]
    %v67 = vpack.c.bf16 %v64, %v63
    %v68 = vpack.c.bf16 %v66, %v65
    %v69 = vld [vmem:[#allocation5] sm:$0xf]
    %v70 = vld [vmem:[#allocation5 + $0x4] sm:$0xf]
    %v71 = vld [vmem:[#allocation5 + $0x8] sm:$0xf]
    %v72 = vld [vmem:[#allocation5 + $0xc] sm:$0xf]
    %v73 = vld [vmem:[#allocation5 + $0x10] sm:$0xf]
    %v74 = vld [vmem:[#allocation5 + $0x14] sm:$0xf]
    %v75 = vld [vmem:[#allocation5 + $0x18] sm:$0xf]
    %v76 = vld [vmem:[#allocation5 + $0x1c] sm:$0xf]
    %v77 = vld [vmem:[#allocation5 + $0x20] sm:$0xf]
    %v78 = vld [vmem:[#allocation5 + $0x24] sm:$0xf]
    %v79 = vld [vmem:[#allocation5 + $0x28] sm:$0xf]
    %v80 = vld [vmem:[#allocation5 + $0x2c] sm:$0xf]
    %v81 = vld [vmem:[#allocation5 + $0x30] sm:$0xf]
    %v82 = vld [vmem:[#allocation5 + $0x34] sm:$0xf]
    %v83 = vld [vmem:[#allocation5 + $0x38] sm:$0xf]
    %v84 = vld [vmem:[#allocation5 + $0x3c] sm:$0xf]
    %v85 = vld [vmem:[%s2] sm:$0x1]
    %v87 = vlaneseq
    %v88 = vshrl.u32 %v87, 7
    %v89 = vsub.s32 0, %v88
    %v90 = vrot.slane %v85, %v89
    %v108 = vunpack.c.l.b16 %v69
    %v109 = vunpack.c.l.b16 %v70
    %v110 = vunpack.c.l.b16 %v71
    %v111 = vunpack.c.l.b16 %v72
    %v112 = vunpack.c.l.b16 %v73
    %v113 = vunpack.c.l.b16 %v74
    %v114 = vunpack.c.l.b16 %v75
    %v115 = vunpack.c.l.b16 %v76
    %v116 = vunpack.c.l.b16 %v77
    %v117 = vunpack.c.l.b16 %v78
    %v118 = vunpack.c.l.b16 %v79
    %v119 = vunpack.c.l.b16 %v80
    %v120 = vunpack.c.l.b16 %v81
    %v121 = vunpack.c.l.b16 %v82
    %v122 = vunpack.c.l.b16 %v83
    %v123 = vunpack.c.l.b16 %v84
    %v124 = vpack.c.b16 %v109, %v108
    %v125 = vpack.c.b16 %v111, %v110
    %v126 = vpack.c.b16 %v113, %v112
    %v127 = vpack.c.b16 %v115, %v114
    %v128 = vpack.c.b16 %v117, %v116
    %v129 = vpack.c.b16 %v119, %v118
    %v130 = vpack.c.b16 %v121, %v120
    %v131 = vpack.c.b16 %v123, %v122
    %140 = vmatprep.subr.bf16.mxu0 0
    %141 = vmatpush1.bf16.msra.mxu0 %v131
    %142 = vmatprep.subr.bf16.mxu0 0
    %143 = vmatpush1.bf16.msra.mxu0 %v130
    %144 = vmatprep.subr.bf16.mxu0 0
    %145 = vmatpush1.bf16.msra.mxu0 %v129
    %146 = vmatprep.subr.bf16.mxu0 0
    %147 = vmatpush1.bf16.msra.mxu0 %v128
    %148 = vmatprep.subr.bf16.mxu0 0
    %149 = vmatpush1.bf16.msra.mxu0 %v127
    %150 = vmatprep.subr.bf16.mxu0 0
    %151 = vmatpush1.bf16.msra.mxu0 %v126
    %152 = vmatprep.subr.bf16.mxu0 0
    %153 = vmatpush1.bf16.msra.mxu0 %v125
    %154 = vmatprep.subr.bf16.mxu0 0
    %155 = vmatpush1.bf16.msra.mxu0 %v124
    %156 = vmatprep.subr.bf16.mxu0 0
    %157 = vmatpush2.bf16.msra.mxu0 0
    %158 = vmatprep.subr.bf16.mxu0 0
    %159 = vmatpush2.bf16.msra.mxu0 0
    %160 = vmatprep.subr.bf16.mxu0 0
    %161 = vmatpush2.bf16.msra.mxu0 0
    %162 = vmatprep.subr.bf16.mxu0 0
    %163 = vmatpush2.bf16.msra.mxu0 0
    %164 = vmatprep.subr.bf16.mxu0 0
    %165 = vmatpush2.bf16.msra.mxu0 0
    %166 = vmatprep.subr.bf16.mxu0 0
    %167 = vmatpush2.bf16.msra.mxu0 0
    %168 = vmatprep.subr.bf16.mxu0 0
    %169 = vmatpush2.bf16.msra.mxu0 0
    %170 = vmatprep.subr.bf16.mxu0 0
    %171 = vmatpush2.bf16.msra.mxu0 0
    %172 = vmatprep.mubr.bf16.mxu0 0
    %173 = vmatmul.mubr.bf16.gmra.mxu0 %v67
    %v174 = vpop.f32.mrf.mxu0
    %v175 = vadd.f32 %v90, %v174
    %v176 = vpop.f32.mrf.mxu0
    %v177 = vpop.f32.mrf.mxu0
    %v178 = vadd.f32 %v90, %v177
    %v179 = vpop.f32.mrf.mxu0
    %180 = vmatprep.mubr.bf16.mxu0 0
    %181 = vmatmul.mubr.bf16.gmra.mxu0 %v68
    %v182 = vpop.f32.mrf.mxu0
    %v183 = vadd.f32 %v90, %v182
    %v184 = vpop.f32.mrf.mxu0
    %v185 = vpop.f32.mrf.mxu0
    %v186 = vadd.f32 %v90, %v185
    %v187 = vpop.f32.mrf.mxu0
    %188 = vdwg.mxu0
    %v189 = vpack.c.bf16 %v178, %v175
    %v190 = vpack.c.bf16 %v186, %v183
    %v191 = vld [vmem:[#allocation7] sm:$0xf]
    %v192 = vld [vmem:[#allocation7 + $0x4] sm:$0xf]
    %v193 = vld [vmem:[#allocation7 + $0x8] sm:$0xf]
    %v194 = vld [vmem:[#allocation7 + $0xc] sm:$0xf]
    %v195 = vld [vmem:[#allocation7 + $0x10] sm:$0xf]
    %v196 = vld [vmem:[#allocation7 + $0x14] sm:$0xf]
    %v197 = vld [vmem:[#allocation7 + $0x18] sm:$0xf]
    %v198 = vld [vmem:[#allocation7 + $0x1c] sm:$0xf]
    %v199 = vld [vmem:[#allocation7 + $0x20] sm:$0xf]
    %v200 = vld [vmem:[#allocation7 + $0x24] sm:$0xf]
    %v201 = vld [vmem:[#allocation7 + $0x28] sm:$0xf]
    %v202 = vld [vmem:[#allocation7 + $0x2c] sm:$0xf]
    %v203 = vld [vmem:[#allocation7 + $0x30] sm:$0xf]
    %v204 = vld [vmem:[#allocation7 + $0x34] sm:$0xf]
    %v205 = vld [vmem:[#allocation7 + $0x38] sm:$0xf]
    %v206 = vld [vmem:[#allocation7 + $0x3c] sm:$0xf]
    %v207 = vld [vmem:[%s4] sm:$0x1]
    %v209 = vlaneseq
    %v210 = vshrl.u32 %v209, 7
    %v211 = vsub.s32 0, %v210
    %v212 = vrot.slane %v207, %v211
    %v230 = vunpack.c.l.b16 %v191
    %v231 = vunpack.c.l.b16 %v192
    %v232 = vunpack.c.l.b16 %v193
    %v233 = vunpack.c.l.b16 %v194
    %v234 = vunpack.c.l.b16 %v195
    %v235 = vunpack.c.l.b16 %v196
    %v236 = vunpack.c.l.b16 %v197
    %v237 = vunpack.c.l.b16 %v198
    %v238 = vunpack.c.l.b16 %v199
    %v239 = vunpack.c.l.b16 %v200
    %v240 = vunpack.c.l.b16 %v201
    %v241 = vunpack.c.l.b16 %v202
    %v242 = vunpack.c.l.b16 %v203
    %v243 = vunpack.c.l.b16 %v204
    %v244 = vunpack.c.l.b16 %v205
    %v245 = vunpack.c.l.b16 %v206
    %v246 = vpack.c.b16 %v231, %v230
    %v247 = vpack.c.b16 %v233, %v232
    %v248 = vpack.c.b16 %v235, %v234
    %v249 = vpack.c.b16 %v237, %v236
    %v250 = vpack.c.b16 %v239, %v238
    %v251 = vpack.c.b16 %v241, %v240
    %v252 = vpack.c.b16 %v243, %v242
    %v253 = vpack.c.b16 %v245, %v244
    %262 = vmatprep.subr.bf16.mxu0 0
    %263 = vmatpush1.bf16.msra.mxu0 %v253
    %264 = vmatprep.subr.bf16.mxu0 0
    %265 = vmatpush1.bf16.msra.mxu0 %v252
    %266 = vmatprep.subr.bf16.mxu0 0
    %267 = vmatpush1.bf16.msra.mxu0 %v251
    %268 = vmatprep.subr.bf16.mxu0 0
    %269 = vmatpush1.bf16.msra.mxu0 %v250
    %270 = vmatprep.subr.bf16.mxu0 0
    %271 = vmatpush1.bf16.msra.mxu0 %v249
    %272 = vmatprep.subr.bf16.mxu0 0
    %273 = vmatpush1.bf16.msra.mxu0 %v248
    %274 = vmatprep.subr.bf16.mxu0 0
    %275 = vmatpush1.bf16.msra.mxu0 %v247
    %276 = vmatprep.subr.bf16.mxu0 0
    %277 = vmatpush1.bf16.msra.mxu0 %v246
    %278 = vmatprep.subr.bf16.mxu0 0
    %279 = vmatpush2.bf16.msra.mxu0 0
    %280 = vmatprep.subr.bf16.mxu0 0
    %281 = vmatpush2.bf16.msra.mxu0 0
    %282 = vmatprep.subr.bf16.mxu0 0
    %283 = vmatpush2.bf16.msra.mxu0 0
    %284 = vmatprep.subr.bf16.mxu0 0
    %285 = vmatpush2.bf16.msra.mxu0 0
    %286 = vmatprep.subr.bf16.mxu0 0
    %287 = vmatpush2.bf16.msra.mxu0 0
    %288 = vmatprep.subr.bf16.mxu0 0
    %289 = vmatpush2.bf16.msra.mxu0 0
    %290 = vmatprep.subr.bf16.mxu0 0
    %291 = vmatpush2.bf16.msra.mxu0 0
    %292 = vmatprep.subr.bf16.mxu0 0
    %293 = vmatpush2.bf16.msra.mxu0 0
    %294 = vmatprep.mubr.bf16.mxu0 0
    %295 = vmatmul.mubr.bf16.gmra.mxu0 %v189
    %v296 = vpop.f32.mrf.mxu0
    %v297 = vadd.f32 %v212, %v296
    %v298 = vpop.f32.mrf.mxu0
    %v299 = vpop.f32.mrf.mxu0
    %v300 = vadd.f32 %v212, %v299
    %v301 = vpop.f32.mrf.mxu0
    %302 = vmatprep.mubr.bf16.mxu0 0
    %303 = vmatmul.mubr.bf16.gmra.mxu0 %v190
    %v304 = vpop.f32.mrf.mxu0
    %v305 = vadd.f32 %v212, %v304
    %v306 = vpop.f32.mrf.mxu0
    %v307 = vpop.f32.mrf.mxu0
    %v308 = vadd.f32 %v212, %v307
    %v309 = vpop.f32.mrf.mxu0
    %310 = vdwg.mxu0
    %311 = vst [vmem:[#allocation8] sm:$0xff] %v297
    %312 = vst [vmem:[#allocation8 + $0x8] sm:$0xff] %v300
    %313 = vst [vmem:[#allocation8 + $0x10] sm:$0xff] %v305
    %314 = vst [vmem:[#allocation8 + $0x18] sm:$0xff] %v308
    // Predicated region
    $region34: #{tpu_custom_call.1} parent=1 // pred_check
      _
    $region35: #{tpu_custom_call.1} parent=1 // pred_check_branch
      %316 = sbr.rel (0) target = $region37
    $region36: #{tpu_custom_call.1} parent=1 // pred_region
      %s318 = ssub.s32 512, 384
      %319 = vsyncadd [#allocation4], %s318
      %s320 = sshll.u32 [#allocation8], 4
      %s321 = int_to_ptr.vmem [resolvable:$true] %s320
      %326 = dma.vmem_to_hbm [thread:$0]  %s321, 384, %s5, [#allocation4], 128, 128, 8
    $region37: #{tpu_custom_call.1} parent=1 // pred_fallthru
      _
    // Predicated region
    $region38: #{tpu_custom_call.1} parent=1 // pred_check
      _
    $region39: #{tpu_custom_call.1} parent=1 // pred_check_branch
      %328 = sbr.rel (0) target = $region41
    $region40: #{tpu_custom_call.1} parent=1 // pred_region
      %329 = dma.done [#allocation4], 512
    $region41: #{tpu_custom_call.1} parent=1 // pred_fallthru
      _
    %330 = vsyncpa [#allocation3], 1
    %331 = vsyncpa [#allocation6], 1
    %332 = vsyncpa [#allocation4], 1

</llo_original>
